<compile_context>
chip_gen: v7x
topology: tpu7x:2x2x1
jax: 0.10.0
libtpu: 0.0.40
codegen_flags: <defaults>
</compile_context>

<pallas_src>
import numpy as np
import jax
import jax.numpy as jnp
from jax import lax
from jax.experimental import pallas as pl
from jax.experimental.pallas import tpu as pltpu

_MIB = 1024 * 1024


def _round_up(x, n):
    return ((x + n - 1) // n) * n


def _tile_bytes(tn, tc, d):
    """Rough VMEM footprint of one (TN, TC) grid step (double-buffered inputs)."""
    return (2 * tn * d * 4        # x row-tile double buffer (f32)
            + 2 * d * tc * 2      # weight tile double buffer (bf16)
            + tn * d * 2          # cached s*x_hat (bf16 MXU lhs)
            + 4 * tn * tc * 4     # wf + exp/select temporaries (estimate)
            + 64 * 1024)          # labels / out / small scratch slack


def _vmem_budget():
    try:
        phys = pltpu.get_tpu_info().vmem_capacity_bytes
    except Exception:
        phys = 64 * _MIB          # conservative fallback (v7x physical VMEM)
    # ~48 MiB on v7x (64 MiB physical), up to 96 MiB on v5e/v6e (128 MiB).
    return min(int(phys * 3 // 4), 96 * _MIB)


def _select_tiles(n, d, cp, tn, tc, budget):
    # Row tile: as large as possible (weight re-streams scale with Np/TN) ...
    if tn is not None:
        TN = int(tn)
    else:
        TN = min(1024, _round_up(n, 8))
        if TN >= _round_up(n, 8) and n > 8:
            # ... but never a single row tile: keep 2 so the "parallel" N axis
            # can shard across v7x's two TensorCores.
            TN = _round_up((n + 1) // 2, 8)
        while TN > 8 and _tile_bytes(TN, 128, d) > budget:
            TN = max(8, _round_up(TN // 2, 8))
    # Class tile: largest multiple of 128 dividing the padded class count that
    # still fits the budget (<= 1024).
    if tc is not None:
        TC = int(tc)
    else:
        TC = 128
        k = 256
        while k <= min(1024, cp):
            if cp % k == 0 and _tile_bytes(TN, k, d) <= budget:
                TC = k
            k += 128
    return TN, TC


def prepare_weight(weight):
    """One-time prep: (C, D) f32 classifier weight -> (D, Cp) bf16, Cp=roundup(C,128).

    Call this ONCE outside the training step so the transpose + cast (a full
    weight-sized HBM read/write) is not re-done on every loss call.
    """
    C, D = weight.shape
    wt = jnp.transpose(weight).astype(jnp.bfloat16)
    Cp = _round_up(C, 128)
    if Cp != C:
        wt = jnp.pad(wt, ((0, 0), (0, Cp - C)))
    return wt, C


def _make_kernel(loss_type, s, m, eps, n_classes, tc, c_padded):
    cos_m = float(np.cos(m))
    sin_m = float(np.sin(m))
    inv_s = 1.0 / s
    NEG = -1e30

    def kernel(x_ref, wt_ref, lab_ref, out_ref, xs_sc, m_sc, l_sc, t_sc):
        j = pl.program_id(1)            # class-tile index (reduction axis, last)

        # ---- init: start of the class sweep for this row tile ----
        @pl.when(j == 0)
        def _():
            x = x_ref[...].astype(jnp.float32)                  # (TN, D)
            sumsq = jnp.sum(x * x, axis=1, keepdims=True)
            # F.normalize(x, p=2, dim=1): x / max(||x||_2, 1e-12)
            xn = x * lax.rsqrt(jnp.maximum(sumsq, 1e-24))
            xs_sc[...] = (s * xn).astype(jnp.bfloat16)          # s folded into lhs
            m_sc[...] = jnp.full_like(m_sc, NEG)                # running max of s*wf
            l_sc[...] = jnp.zeros_like(l_sc)                    # running sum of exp
            t_sc[...] = jnp.zeros_like(t_sc)                    # target logit s*wf[i,y_i]

        # ---- streaming class block: z = s * (x_hat @ W^T)  (bf16 in, f32 acc) ----
        z = lax.dot_general(
            xs_sc[...], wt_ref[...],
            (((1,), (0,)), ((), ())),
            preferred_element_type=jnp.float32)                 # (TN, TC) f32

        labels = lab_ref[...]                                   # (TN, 1) int32
        col = j * tc + lax.broadcasted_iota(jnp.int32, (1, tc), 1)   # (1, TC)
        is_target = (col == labels)                             # (TN, TC) via bcast

        # accumulate target logit; exclude it (and padded classes) from the LSE
        t_sc[...] += jnp.sum(jnp.where(is_target, z, 0.0), axis=1, keepdims=True)
        if c_padded:
            excl = is_target | (col >= n_classes)
        else:
            excl = is_target
        ze = jnp.where(excl, NEG, z)

        # online log-sum-exp over the excluded-class logits
        tile_max = jnp.max(ze, axis=1, keepdims=True)
        m_old = m_sc[...]
        m_new = jnp.maximum(m_old, tile_max)
        l_sc[...] = (l_sc[...] * jnp.exp(m_old - m_new)
                     + jnp.sum(jnp.exp(ze - m_new), axis=1, keepdims=True))
        m_sc[...] = m_new

        # ---- finalize: margin numerator + stabilized log-denominator ----
        @pl.when(j == pl.num_programs(1) - 1)
        def _():
            target = t_sc[...] * inv_s                          # cos(theta_y), (TN,1)
            m_run = m_sc[...]
            l_run = l_sc[...]                                   # excludes label column

            if loss_type == "arcface":
                t = jnp.clip(target, -1.0 + eps, 1.0 - eps)
                # cos(acos(t) + m) == t*cos(m) - sqrt(1-t^2)*sin(m) (exact identity,
                # avoids acos which has no clean Mosaic lowering)
                numer = s * (t * cos_m - jnp.sqrt(1.0 - t * t) * sin_m)
            else:  # cosface
                numer = s * (target - m)

            # log( exp(numer) + sum_{j != y} exp(s*wf_j) ), stabilized
            big = jnp.maximum(numer, m_run)
            log_denom = big + jnp.log(jnp.exp(numer - big)
                                      + jnp.exp(m_run - big) * l_run)
            out_ref[...] = numer - log_denom                    # per-row L

    return kernel


def angular_penalty_sm_loss(x, labels, weight_t, n_classes, loss_type="arcface",
                            eps=1e-7, s=None, m=None, tn=None, tc=None):
    """x: (N, D) f32; labels: (N,) int; weight_t: (D, Cp) bf16 from prepare_weight."""
    loss_type = loss_type.lower()
    assert loss_type in ("arcface", "sphereface", "cosface")
    if loss_type == "sphereface":
        # TODO(synk): sphereface needs cos(m*acos(t)) with non-integer m; acos has
        # no clean Pallas/EUP primitive, so it is not implemented here.
        raise NotImplementedError("sphereface")
    defaults = {"arcface": (64.0, 0.5), "cosface": (30.0, 0.4),
                "sphereface": (64.0, 1.35)}
    d_s, d_m = defaults[loss_type]
    s = d_s if s is None else float(s)   # (avoids the PyTorch `if not s` 0.0 bug)
    m = d_m if m is None else float(m)

    N, D = x.shape
    D2, Cp = weight_t.shape
    C = int(n_classes)
    assert D == D2 and labels.shape == (N,) and Cp >= C

    budget = _vmem_budget()
    TN, TC = _select_tiles(N, D, Cp, tn, tc, budget)

    wt = weight_t
    if Cp % TC != 0:                      # only possible with a user-provided `tc`
        new_cp = _round_up(Cp, TC)
        wt = jnp.pad(wt, ((0, 0), (0, new_cp - Cp)))
        Cp = new_cp

    Np = _round_up(N, TN)
    xp = x.astype(jnp.float32)
    labp = labels.astype(jnp.int32)
    if Np != N:
        xp = jnp.pad(xp, ((0, Np - N), (0, 0)))
        labp = jnp.pad(labp, (0, Np - N))
    labp = labp.reshape(Np, 1)

    kernel = _make_kernel(loss_type, float(s), float(m), float(eps), C, TC, Cp != C)
    grid = (Np // TN, Cp // TC)

    vlim = int(min(max(int(_tile_bytes(TN, TC, D) * 1.3), 32 * _MIB),
                   max(budget, 32 * _MIB)))

    cost = pl.CostEstimate(
        flops=2 * Np * Cp * D,
        transcendentals=Np * Cp + 8 * Np,
        bytes_accessed=Np * D * 4 + grid[0] * Cp * D * 2 + Np * 8)

    L = pl.pallas_call(
        kernel,
        out_shape=jax.ShapeDtypeStruct((Np, 1), jnp.float32),
        grid_spec=pltpu.PrefetchScalarGridSpec(
            num_scalar_prefetch=0,
            grid=grid,
            in_specs=[
                pl.BlockSpec((TN, D), lambda i, j: (i, 0)),    # x rows (f32)
                pl.BlockSpec((D, TC), lambda i, j: (0, j)),    # weight^T (bf16)
                pl.BlockSpec((TN, 1), lambda i, j: (i, 0)),    # labels column
            ],
            out_specs=pl.BlockSpec((TN, 1), lambda i, j: (i, 0)),
            scratch_shapes=[
                pltpu.VMEM((TN, D), jnp.bfloat16),   # s * normalized rows (MXU lhs)
                pltpu.VMEM((TN, 1), jnp.float32),    # running max of s*wf (excl.)
                pltpu.VMEM((TN, 1), jnp.float32),    # running sum of exp (excl.)
                pltpu.VMEM((TN, 1), jnp.float32),    # target logit s*wf[i, y_i]
            ]),
        compiler_params=pltpu.CompilerParams(
            dimension_semantics=("parallel", "arbitrary"),
            vmem_limit_bytes=vlim),
        cost_estimate=cost,
    )(xp, wt, labp)

    return -jnp.mean(L[:N, 0])


def _reference(x, weight, labels, loss_type="arcface", eps=1e-7, s=64.0, m=0.5):
    # pure-JAX f32 reference with identical semantics (x normalized, W NOT normalized)
    xn = x / jnp.maximum(jnp.linalg.norm(x, axis=1, keepdims=True), 1e-12)
    wf = xn @ weight.T
    idx = jnp.arange(x.shape[0])
    target = wf[idx, labels]
    if loss_type == "arcface":
        numer = s * jnp.cos(jnp.arccos(jnp.clip(target, -1.0 + eps, 1.0 - eps)) + m)
    elif loss_type == "cosface":
        numer = s * (target - m)
    else:
        raise NotImplementedError(loss_type)
    sum_excl = jnp.sum(jnp.exp(s * wf), axis=1) - jnp.exp(s * target)
    denom = jnp.exp(numer) + sum_excl
    return -jnp.mean(numer - jnp.log(denom))


if __name__ == "__main__":
    # Small but tiling-exercising shapes.
    N, in_features, out_features = 16, 64, 256

    key = jax.random.PRNGKey(0)
    kx, kw, kl = jax.random.split(key, 3)

    x = jax.random.normal(kx, (N, in_features), dtype=jnp.float32)
    # nn.Linear(in, out, bias=False) weight: (out, in), U(-1/sqrt(in), 1/sqrt(in))
    bound = 1.0 / np.sqrt(in_features)
    weight = jax.random.uniform(kw, (out_features, in_features),
                                minval=-bound, maxval=bound, dtype=jnp.float32)
    labels = jax.random.randint(kl, (N,), 0, out_features, dtype=jnp.int32)

    # Pre-transpose/cast the classifier weight ONCE (outside the training step).
    wt, C = prepare_weight(weight)

    for lt, ds_, dm_ in (("arcface", 64.0, 0.5), ("cosface", 30.0, 0.4)):
        ref = _reference(x, weight, labels, loss_type=lt, s=ds_, m=dm_)
        # default (large-tile) path and an explicit multi-tile path (2x2 grid,
        # exercises the online-LSE class sweep)
        for kwargs in ({}, {"tn": 8, "tc": 128}):
            loss = angular_penalty_sm_loss(x, labels, wt, C, loss_type=lt, **kwargs)
            loss = jax.block_until_ready(loss)
            # tolerance covers the bf16-MXU (f32-accumulate) matmul path
            np.testing.assert_allclose(np.asarray(loss), np.asarray(ref),
                                       rtol=2e-2, atol=5e-2)

    print("KERNEL_OK")
</pallas_src>

<mosaic_0001>
module attributes {stable_mosaic.version = 11 : i64} {
  func.func @kernel(%arg0: i32, %arg1: i32, %arg2: memref<8x64xf32, #tpu.memory_space<vmem>>, %arg3: memref<64x256xbf16, #tpu.memory_space<vmem>>, %arg4: memref<8x1xi32, #tpu.memory_space<vmem>>, %arg5: memref<8x1xf32, #tpu.memory_space<vmem>>, %arg6: memref<8x64xbf16, #tpu.memory_space<vmem>>, %arg7: memref<8x1xf32, #tpu.memory_space<vmem>>, %arg8: memref<8x1xf32, #tpu.memory_space<vmem>>, %arg9: memref<8x1xf32, #tpu.memory_space<vmem>>) attributes {dimension_semantics = [#tpu.dimension_semantics<parallel>, #tpu.dimension_semantics<arbitrary>], iteration_bounds = array<i64: 2, 1>, scalar_prefetch = 0 : i64, scratch_operands = 4 : i64, tpu.core_type = #tpu.core_type<tc>, window_params = [{transform_indices = @transform_0, window_bounds = array<i64: 8, 64>}, {transform_indices = @transform_1, window_bounds = array<i64: 64, 256>}, {transform_indices = @transform_2, window_bounds = array<i64: 8, 1>}, {transform_indices = @transform_3, window_bounds = array<i64: 8, 1>}]} {
    %c0_i32 = arith.constant 0 : i32
    %0 = arith.cmpi eq, %arg1, %c0_i32 : i32
    %1 = arith.extui %0 : i1 to i32
    %c0_i32_0 = arith.constant 0 : i32
    %2 = arith.cmpi ne, %1, %c0_i32_0 : i32
    scf.if %2 {
      %c0_25 = arith.constant 0 : index
      %c0_26 = arith.constant 0 : index
      %42 = vector.load %arg2[%c0_25, %c0_26] : memref<8x64xf32, #tpu.memory_space<vmem>>, vector<8x64xf32>
      %43 = arith.mulf %42, %42 : vector<8x64xf32>
      %cst_27 = arith.constant dense<0.000000e+00> : vector<8xf32>
      %44 = vector.multi_reduction <add>, %43, %cst_27 [1] : vector<8x64xf32> to vector<8xf32>
      %45 = vector.shape_cast %44 : vector<8xf32> to vector<8x1xf32>
      %cst_28 = arith.constant 1.000000e-24 : f32
      %46 = vector.broadcast %cst_28 : f32 to vector<8x1xf32>
      %47 = arith.maximumf %45, %46 : vector<8x1xf32>
      %48 = math.rsqrt %47 : vector<8x1xf32>
      %49 = vector.broadcast %48 : vector<8x1xf32> to vector<8x64xf32>
      %50 = arith.mulf %42, %49 : vector<8x64xf32>
      %cst_29 = arith.constant 6.400000e+01 : f32
      %51 = vector.broadcast %cst_29 : f32 to vector<8x64xf32>
      %52 = arith.mulf %51, %50 : vector<8x64xf32>
      %53 = arith.truncf %52 : vector<8x64xf32> to vector<8x64xbf16>
      %c0_30 = arith.constant 0 : index
      %c0_31 = arith.constant 0 : index
      %54 = vector.load %arg6[%c0_30, %c0_31] : memref<8x64xbf16, #tpu.memory_space<vmem>>, vector<8x64xbf16>
      tpu.vector_store %arg6[%c0_30, %c0_31], %53 {strides = array<i32>} : memref<8x64xbf16, #tpu.memory_space<vmem>>, vector<8x64xbf16>,
      %cst_32 = arith.constant -1.000000e+30 : f32
      %55 = vector.broadcast %cst_32 : f32 to vector<8x1xf32>
      %c0_33 = arith.constant 0 : index
      %c0_34 = arith.constant 0 : index
      %56 = vector.load %arg7[%c0_33, %c0_34] : memref<8x1xf32, #tpu.memory_space<vmem>>, vector<8x1xf32>
      tpu.vector_store %arg7[%c0_33, %c0_34], %55 {strides = array<i32>} : memref<8x1xf32, #tpu.memory_space<vmem>>, vector<8x1xf32>,
      %cst_35 = arith.constant 0.000000e+00 : f32
      %57 = vector.broadcast %cst_35 : f32 to vector<8x1xf32>
      %c0_36 = arith.constant 0 : index
      %c0_37 = arith.constant 0 : index
      %58 = vector.load %arg8[%c0_36, %c0_37] : memref<8x1xf32, #tpu.memory_space<vmem>>, vector<8x1xf32>
      tpu.vector_store %arg8[%c0_36, %c0_37], %57 {strides = array<i32>} : memref<8x1xf32, #tpu.memory_space<vmem>>, vector<8x1xf32>,
      %cst_38 = arith.constant 0.000000e+00 : f32
      %59 = vector.broadcast %cst_38 : f32 to vector<8x1xf32>
      %c0_39 = arith.constant 0 : index
      %c0_40 = arith.constant 0 : index
      %60 = vector.load %arg9[%c0_39, %c0_40] : memref<8x1xf32, #tpu.memory_space<vmem>>, vector<8x1xf32>
      tpu.vector_store %arg9[%c0_39, %c0_40], %59 {strides = array<i32>} : memref<8x1xf32, #tpu.memory_space<vmem>>, vector<8x1xf32>,
    } else {
    }
    %c0 = arith.constant 0 : index
    %c0_1 = arith.constant 0 : index
    %3 = vector.load %arg6[%c0, %c0_1] : memref<8x64xbf16, #tpu.memory_space<vmem>>, vector<8x64xbf16>
    %c0_2 = arith.constant 0 : index
    %c0_3 = arith.constant 0 : index
    %4 = vector.load %arg3[%c0_2, %c0_3] : memref<64x256xbf16, #tpu.memory_space<vmem>>, vector<64x256xbf16>
    %cst = arith.constant dense<0.000000e+00> : vector<8x256xf32>
    %5 = tpu.matmul %3, %4, %cst {dimension_numbers = #tpu.dot_dimension_numbers<[1], [0], [0], [1], [0, 0, 1, 1], [], []>} : vector<8x64xbf16>, vector<64x256xbf16>, vector<8x256xf32> -> vector<8x256xf32>
    %c0_4 = arith.constant 0 : index
    %c0_5 = arith.constant 0 : index
    %6 = vector.load %arg4[%c0_4, %c0_5] : memref<8x1xi32, #tpu.memory_space<vmem>>, vector<8x1xi32>
    %c256_i32 = arith.constant 256 : i32
    %7 = arith.muli %arg1, %c256_i32 : i32
    %8 = tpu.iota {dimensions = array<i32: 1>} : vector<1x256xi32>
    %9 = vector.broadcast %7 : i32 to vector<1x256xi32>
    %10 = arith.addi %9, %8 : vector<1x256xi32>
    %11 = vector.broadcast %10 : vector<1x256xi32> to vector<8x256xi32>
    %12 = vector.broadcast %6 : vector<8x1xi32> to vector<8x256xi32>
    %13 = arith.cmpi eq, %11, %12 : vector<8x256xi32>
    %c0_6 = arith.constant 0 : index
    %c0_7 = arith.constant 0 : index
    %14 = vector.load %arg9[%c0_6, %c0_7] : memref<8x1xf32, #tpu.memory_space<vmem>>, vector<8x1xf32>
    %cst_8 = arith.constant 0.000000e+00 : f32
    %15 = vector.broadcast %cst_8 : f32 to vector<8x256xf32>
    %16 = arith.select %13, %5, %15 : vector<8x256xi1>, vector<8x256xf32>
    %cst_9 = arith.constant dense<0.000000e+00> : vector<8xf32>
    %17 = vector.multi_reduction <add>, %16, %cst_9 [1] : vector<8x256xf32> to vector<8xf32>
    %18 = vector.shape_cast %17 : vector<8xf32> to vector<8x1xf32>
    %19 = arith.addf %14, %18 : vector<8x1xf32>
    %c0_10 = arith.constant 0 : index
    %c0_11 = arith.constant 0 : index
    %20 = vector.load %arg9[%c0_10, %c0_11] : memref<8x1xf32, #tpu.memory_space<vmem>>, vector<8x1xf32>
    tpu.vector_store %arg9[%c0_10, %c0_11], %19 {strides = array<i32>} : memref<8x1xf32, #tpu.memory_space<vmem>>, vector<8x1xf32>,
    %cst_12 = arith.constant -1.000000e+30 : f32
    %21 = vector.broadcast %cst_12 : f32 to vector<8x256xf32>
    %22 = arith.select %13, %21, %5 : vector<8x256xi1>, vector<8x256xf32>
    %cst_13 = arith.constant dense<0xFF800000> : vector<8xf32>
    %23 = vector.multi_reduction <maximumf>, %22, %cst_13 [1] : vector<8x256xf32> to vector<8xf32>
    %24 = vector.shape_cast %23 : vector<8xf32> to vector<8x1xf32>
    %c0_14 = arith.constant 0 : index
    %c0_15 = arith.constant 0 : index
    %25 = vector.load %arg7[%c0_14, %c0_15] : memref<8x1xf32, #tpu.memory_space<vmem>>, vector<8x1xf32>
    %26 = arith.maximumf %25, %24 : vector<8x1xf32>
    %c0_16 = arith.constant 0 : index
    %c0_17 = arith.constant 0 : index
    %27 = vector.load %arg8[%c0_16, %c0_17] : memref<8x1xf32, #tpu.memory_space<vmem>>, vector<8x1xf32>
    %28 = arith.subf %25, %26 : vector<8x1xf32>
    %29 = math.exp %28 : vector<8x1xf32>
    %30 = arith.mulf %27, %29 : vector<8x1xf32>
    %31 = vector.broadcast %26 : vector<8x1xf32> to vector<8x256xf32>
    %32 = arith.subf %22, %31 : vector<8x256xf32>
    %33 = math.exp %32 : vector<8x256xf32>
    %cst_18 = arith.constant dense<0.000000e+00> : vector<8xf32>
    %34 = vector.multi_reduction <add>, %33, %cst_18 [1] : vector<8x256xf32> to vector<8xf32>
    %35 = vector.shape_cast %34 : vector<8xf32> to vector<8x1xf32>
    %36 = arith.addf %30, %35 : vector<8x1xf32>
    %c0_19 = arith.constant 0 : index
    %c0_20 = arith.constant 0 : index
    %37 = vector.load %arg8[%c0_19, %c0_20] : memref<8x1xf32, #tpu.memory_space<vmem>>, vector<8x1xf32>
    tpu.vector_store %arg8[%c0_19, %c0_20], %36 {strides = array<i32>} : memref<8x1xf32, #tpu.memory_space<vmem>>, vector<8x1xf32>,
    %c0_21 = arith.constant 0 : index
    %c0_22 = arith.constant 0 : index
    %38 = vector.load %arg7[%c0_21, %c0_22] : memref<8x1xf32, #tpu.memory_space<vmem>>, vector<8x1xf32>
    tpu.vector_store %arg7[%c0_21, %c0_22], %26 {strides = array<i32>} : memref<8x1xf32, #tpu.memory_space<vmem>>, vector<8x1xf32>,
    %c0_i32_23 = arith.constant 0 : i32
    %39 = arith.cmpi eq, %arg1, %c0_i32_23 : i32
    %40 = arith.extui %39 : i1 to i32
    %c0_i32_24 = arith.constant 0 : i32
    %41 = arith.cmpi ne, %40, %c0_i32_24 : i32
    scf.if %41 {
      %c0_25 = arith.constant 0 : index
      %c0_26 = arith.constant 0 : index
      %42 = vector.load %arg9[%c0_25, %c0_26] : memref<8x1xf32, #tpu.memory_space<vmem>>, vector<8x1xf32>
      %cst_27 = arith.constant 1.562500e-02 : f32
      %43 = vector.broadcast %cst_27 : f32 to vector<8x1xf32>
      %44 = arith.mulf %42, %43 : vector<8x1xf32>
      %c0_28 = arith.constant 0 : index
      %c0_29 = arith.constant 0 : index
      %45 = vector.load %arg7[%c0_28, %c0_29] : memref<8x1xf32, #tpu.memory_space<vmem>>, vector<8x1xf32>
      %c0_30 = arith.constant 0 : index
      %c0_31 = arith.constant 0 : index
      %46 = vector.load %arg8[%c0_30, %c0_31] : memref<8x1xf32, #tpu.memory_space<vmem>>, vector<8x1xf32>
      %cst_32 = arith.constant -0.99999988 : f32
      %cst_33 = arith.constant 0.99999988 : f32
      %47 = vector.broadcast %cst_32 : f32 to vector<8x1xf32>
      %48 = arith.maximumf %47, %44 : vector<8x1xf32>
      %49 = vector.broadcast %cst_33 : f32 to vector<8x1xf32>
      %50 = arith.minimumf %49, %48 : vector<8x1xf32>
      %cst_34 = arith.constant 0.87758255 : f32
      %51 = vector.broadcast %cst_34 : f32 to vector<8x1xf32>
      %52 = arith.mulf %50, %51 : vector<8x1xf32>
      %53 = arith.mulf %50, %50 : vector<8x1xf32>
      %cst_35 = arith.constant 1.000000e+00 : f32
      %54 = vector.broadcast %cst_35 : f32 to vector<8x1xf32>
      %55 = arith.subf %54, %53 : vector<8x1xf32>
      %56 = math.sqrt %55 : vector<8x1xf32>
      %cst_36 = arith.constant 0.47942555 : f32
      %57 = vector.broadcast %cst_36 : f32 to vector<8x1xf32>
      %58 = arith.mulf %56, %57 : vector<8x1xf32>
      %59 = arith.subf %52, %58 : vector<8x1xf32>
      %cst_37 = arith.constant 6.400000e+01 : f32
      %60 = vector.broadcast %cst_37 : f32 to vector<8x1xf32>
      %61 = arith.mulf %60, %59 : vector<8x1xf32>
      %62 = arith.maximumf %61, %45 : vector<8x1xf32>
      %63 = arith.subf %61, %62 : vector<8x1xf32>
      %64 = math.exp %63 : vector<8x1xf32>
      %65 = arith.subf %45, %62 : vector<8x1xf32>
      %66 = math.exp %65 : vector<8x1xf32>
      %67 = arith.mulf %66, %46 : vector<8x1xf32>
      %68 = arith.addf %64, %67 : vector<8x1xf32>
      %69 = math.log %68 : vector<8x1xf32>
      %70 = arith.addf %62, %69 : vector<8x1xf32>
      %71 = arith.subf %61, %70 : vector<8x1xf32>
      %c0_38 = arith.constant 0 : index
      %c0_39 = arith.constant 0 : index
      %72 = vector.load %arg5[%c0_38, %c0_39] : memref<8x1xf32, #tpu.memory_space<vmem>>, vector<8x1xf32>
      tpu.vector_store %arg5[%c0_38, %c0_39], %71 {strides = array<i32>} : memref<8x1xf32, #tpu.memory_space<vmem>>, vector<8x1xf32>,
    } else {
    }
    return
  }
  func.func @transform_0(%arg0: i32, %arg1: i32) -> (i32, i32) {
    %c0_i32 = arith.constant 0 : i32
    %c0_i32_0 = arith.constant 0 : i32
    return %arg0, %c0_i32 : i32, i32
  }
  func.func @transform_1(%arg0: i32, %arg1: i32) -> (i32, i32) {
    %c0_i32 = arith.constant 0 : i32
    %c0_i32_0 = arith.constant 0 : i32
    return %c0_i32, %arg1 : i32, i32
  }
  func.func @transform_2(%arg0: i32, %arg1: i32) -> (i32, i32) {
    %c0_i32 = arith.constant 0 : i32
    %c0_i32_0 = arith.constant 0 : i32
    return %arg0, %c0_i32 : i32, i32
  }
  func.func @transform_3(%arg0: i32, %arg1: i32) -> (i32, i32) {
    %c0_i32 = arith.constant 0 : i32
    %c0_i32_0 = arith.constant 0 : i32
    return %arg0, %c0_i32 : i32, i32
  }
}

</mosaic_0001>

<llo_original>
// kernel: tpu_custom_call.1
$region0: #{tpu_custom_call.1}
  #allocation0 [shape = 'u32[]', space=smem, size = 0x4, offset = 0x4, fixed_abs, tag = 'smem constant byte address 0x4 - core index']
  #allocation1 [shape = 'u32[144,128]{1,0:T(1,128)}', space=vmem, size = 0x12000, scoped, tag = 'internal scratch']
  #allocation2 [shape = 'bf16[8,64]{1,0:T(8,128)(2,1)}', space=vmem, size = 0x800, scoped, tag = 'scratch operand']
  #allocation3 [shape = 'f32[8,1]{1,0:T(8,128)}', space=vmem, size = 0x1000, scoped, tag = 'scratch operand']
  #allocation4 [shape = 'f32[8,1]{1,0:T(8,128)}', space=vmem, size = 0x1000, scoped, tag = 'scratch operand']
  #allocation5 [shape = 'f32[8,1]{1,0:T(8,128)}', space=vmem, size = 0x1000, scoped, tag = 'scratch operand']
  %s0 = inlined_call_operand.vmem [shape: f32[16,64], index: 0, kind: input, shape index: {}]
  %s1 = inlined_call_operand.hbm [shape: bf16[64,256], index: 1, kind: input, shape index: {}]
  %s2 = inlined_call_operand.vmem [shape: s32[16,1], index: 2, kind: input, shape index: {}]
  %s3 = inlined_call_operand.vmem [shape: f32[16,1], index: 3, kind: output, shape index: {}]
  %s4 = sld [smem:[#allocation0]]
  $region57: #{tpu_custom_call.1} parent=0
    _
  %s6 = ssub.s32 1, %s4
  %s7 = scalar_select 0, %s6, %s4
  $region1: #{tpu_custom_call.1} parent=0
    #allocation6 [shape = 'u8[32768]{0}', space=vmem, size = 0x8000, scoped, tag = 'input window, operand 1, single buffered']
    #allocation7 [shape = 's32[2]{0}', space=sflag, size = 0x8, scoped, tag = 'scoped memory for tpu_custom_call.1']
    %8 = vsyncpa [#allocation7], 0
    loop: start=0, step=1, limit=4
    $region2: #{tpu_custom_call.1} parent=1 // loop_pre_header
      _
    $region3: #{tpu_custom_call.1} parent=1 // loop_header
      %s10 = sphi 0, %s14
      %p11 = scmp.ge.s32.totalorder %s10, 4
      %s17 = sphi 0, %s29
      %s18 = sphi 0, %s25
      %s19 = sphi 0, %s17
      %s20 = sphi 0, %s18
      %s21 = sphi 0, %s19
      %s22 = sphi 0, %s20
      %s32 = sphi 0, %s34
      %s35 = sphi 0, %s32
      %s36 = sphi 0, %s35
      %s52 = sphi 0, %s36
      %s58 = sphi 0, %s60
      %s61 = sphi 0, %s58
      %s62 = sphi 0, %s61
      %s78 = sphi 0, %s62
      %s84 = sphi 0, %s86
      %s87 = sphi 0, %s84
      %s88 = sphi 0, %s87
      %s104 = sphi 0, %s88
      %s110 = sphi 0, %s112
      %s113 = sphi 0, %s110
      %s114 = sphi 0, %s113
      %s130 = sphi 0, %s114
    $region4: #{tpu_custom_call.1} parent=1 // loop_header_branch
      %13 = sbr.rel (%p11) target = $region8
    $region5: #{tpu_custom_call.1} parent=1 // loop_body
      %s15 = ssub.s32 %s10, 1
      %s16 = ssub.s32 %s10, 2
      %s23 = sadd.s32 1, %s18
      %p24 = scmp.ge.s32.totalorder %s23, 1
      %s25 = scalar_select %p24, 0, %s23
      %s26 = sadd.s32 1, %s17
      %s27 = scalar_select %p24, %s26, %s17
      %p28 = scmp.ge.s32.totalorder %s27, 2
      %s29 = scalar_select %p28, 0, %s27
      %s30 = ssub.s32 %s17, %s29
      %p31 = scmp.eq.s32.totalorder %s30, 0
      %s33 = sadd.s32 %s32, 1
      %s34 = scalar_select %p31, %s32, %s33
      %p37 = pneg %p31
      %p38 = scmp.eq.s32.totalorder %s10, 1
      %p39 = por %p37, %p38
      %p40 = scmp.ne.s32.totalorder %s32, %s35
      %p41 = scmp.eq.s32.totalorder %s10, 0
      %p42 = por %p40, %p41
      %p43 = scmp.ne.s32.totalorder %s32, %s35
      %p44 = scmp.eq.s32.totalorder %s15, 1
      %p45 = por %p43, %p44
      %p46 = scmp.ne.s32.totalorder %s35, %s36
      %p47 = scmp.eq.s32.totalorder %s15, 0
      %p48 = por %p46, %p47
      %p49 = scmp.ne.s32.totalorder %s35, %s36
      %p50 = scmp.eq.s32.totalorder %s16, 1
      %p51 = por %p49, %p50
      %p53 = scmp.ne.s32.totalorder %s36, %s52
      %p54 = scmp.eq.s32.totalorder %s16, 0
      %p55 = por %p53, %p54
      %s56 = ssub.s32 %s18, %s25
      %p57 = scmp.eq.s32.totalorder %s56, 0
      %s59 = sadd.s32 %s58, 1
      %s60 = scalar_select %p57, %s58, %s59
      %p63 = pneg %p57
      %p64 = scmp.eq.s32.totalorder %s10, 1
      %p65 = por %p63, %p64
      %p66 = scmp.ne.s32.totalorder %s58, %s61
      %p67 = scmp.eq.s32.totalorder %s10, 0
      %p68 = por %p66, %p67
      %p69 = scmp.ne.s32.totalorder %s58, %s61
      %p70 = scmp.eq.s32.totalorder %s15, 1
      %p71 = por %p69, %p70
      %p72 = scmp.ne.s32.totalorder %s61, %s62
      %p73 = scmp.eq.s32.totalorder %s15, 0
      %p74 = por %p72, %p73
      %p75 = scmp.ne.s32.totalorder %s61, %s62
      %p76 = scmp.eq.s32.totalorder %s16, 1
      %p77 = por %p75, %p76
      %p79 = scmp.ne.s32.totalorder %s62, %s78
      %p80 = scmp.eq.s32.totalorder %s16, 0
      %p81 = por %p79, %p80
      %s82 = ssub.s32 %s17, %s29
      %p83 = scmp.eq.s32.totalorder %s82, 0
      %s85 = sadd.s32 %s84, 1
      %s86 = scalar_select %p83, %s84, %s85
      %p89 = pneg %p83
      %p90 = scmp.eq.s32.totalorder %s10, 1
      %p91 = por %p89, %p90
      %p92 = scmp.ne.s32.totalorder %s84, %s87
      %p93 = scmp.eq.s32.totalorder %s10, 0
      %p94 = por %p92, %p93
      %p95 = scmp.ne.s32.totalorder %s84, %s87
      %p96 = scmp.eq.s32.totalorder %s15, 1
      %p97 = por %p95, %p96
      %p98 = scmp.ne.s32.totalorder %s87, %s88
      %p99 = scmp.eq.s32.totalorder %s15, 0
      %p100 = por %p98, %p99
      %p101 = scmp.ne.s32.totalorder %s87, %s88
      %p102 = scmp.eq.s32.totalorder %s16, 1
      %p103 = por %p101, %p102
      %p105 = scmp.ne.s32.totalorder %s88, %s104
      %p106 = scmp.eq.s32.totalorder %s16, 0
      %p107 = por %p105, %p106
      %s108 = ssub.s32 %s17, %s29
      %p109 = scmp.eq.s32.totalorder %s108, 0
      %s111 = sadd.s32 %s110, 1
      %s112 = scalar_select %p109, %s110, %s111
      %p115 = pneg %p109
      %p116 = scmp.eq.s32.totalorder %s10, 1
      %p117 = por %p115, %p116
      %p118 = scmp.ne.s32.totalorder %s110, %s113
      %p119 = scmp.eq.s32.totalorder %s10, 0
      %p120 = por %p118, %p119
      %p121 = scmp.ne.s32.totalorder %s110, %s113
      %p122 = scmp.eq.s32.totalorder %s15, 1
      %p123 = por %p121, %p122
      %p124 = scmp.ne.s32.totalorder %s113, %s114
      %p125 = scmp.eq.s32.totalorder %s15, 0
      %p126 = por %p124, %p125
      %p127 = scmp.ne.s32.totalorder %s113, %s114
      %p128 = scmp.eq.s32.totalorder %s16, 1
      %p129 = por %p127, %p128
      %p131 = scmp.ne.s32.totalorder %s114, %s130
      %p132 = scmp.eq.s32.totalorder %s16, 0
      %p133 = por %p131, %p132
      %p134 = scmp.le.s32.totalorder 1, %s10
      %p135 = scmp.lt.s32.totalorder %s10, 3
      %p136 = pnand %p134, %p135
      %p137 = pneg %p136
      // Predicated region
      $region9: #{tpu_custom_call.1} parent=5 // pred_check
        _
      $region10: #{tpu_custom_call.1} parent=5 // pred_check_branch
        %139 = sbr.rel (%p136) target = $region12
      $region11: #{tpu_custom_call.1} parent=5 // pred_region
        %s140 = ssub.s32 %s10, 1
        // Predicated region
        $region13: #{tpu_custom_call.1} parent=11 // pred_check
          %p141 = pneg %p74
        $region14: #{tpu_custom_call.1} parent=11 // pred_check_branch
          %143 = sbr.rel (%p141) target = $region16
        $region15: #{tpu_custom_call.1} parent=11 // pred_region
          %s144 = smul.u32 2, %s20
          %s146 = ssub.s32 1024, 1024
          %147 = vsyncadd [#allocation7], %s146
          %s148 = smul.addr %s144, 64
          %s149 = scalar_lea.hbm %s1, %s148
          %s150 = sshll.u32 [#allocation6], 4
          %s151 = int_to_ptr.vmem [resolvable:$true] %s150
          %156 = dma.hbm_to_vmem [thread:$0]  %s149, 1024, %s151, [#allocation7], 128, 128, 8
        $region16: #{tpu_custom_call.1} parent=11 // pred_fallthru
          _
      $region12: #{tpu_custom_call.1} parent=5 // pred_fallthru
        _
      %p157 = scmp.lt.s32.totalorder %s10, 2
      // Predicated region
      $region17: #{tpu_custom_call.1} parent=5 // pred_check
        %p158 = pneg %p157
      $region18: #{tpu_custom_call.1} parent=5 // pred_check_branch
        %160 = sbr.rel (%p158) target = $region20
      $region19: #{tpu_custom_call.1} parent=5 // pred_region
        // Predicated region
        $region21: #{tpu_custom_call.1} parent=19 // pred_check
          %p161 = pneg %p42
        $region22: #{tpu_custom_call.1} parent=19 // pred_check_branch
          %163 = sbr.rel (%p161) target = $region24
        $region23: #{tpu_custom_call.1} parent=19 // pred_region
          %p164 = scmp.lt.s32.totalorder %s17, 1
          %s165 = scalar_select %p164, %s17, 1
          %s166 = smul.addr %s165, 8
          %s167 = scalar_lea.vmem %s0, %s166
        $region24: #{tpu_custom_call.1} parent=19 // pred_fallthru
          _
        // Predicated region
        $region25: #{tpu_custom_call.1} parent=19 // pred_check
          %p168 = pneg %p94
        $region26: #{tpu_custom_call.1} parent=19 // pred_check_branch
          %170 = sbr.rel (%p168) target = $region28
        $region27: #{tpu_custom_call.1} parent=19 // pred_region
          %p171 = scmp.lt.s32.totalorder %s17, 1
          %s172 = scalar_select %p171, %s17, 1
          %s173 = smul.addr %s172, 8
          %s174 = scalar_lea.vmem %s2, %s173
        $region28: #{tpu_custom_call.1} parent=19 // pred_fallthru
          _
      $region20: #{tpu_custom_call.1} parent=5 // pred_fallthru
        _
      %p175 = scmp.le.s32.totalorder 1, %s10
      %p176 = scmp.lt.s32.totalorder %s10, 3
      %p177 = pnand %p175, %p176
      %p178 = pneg %p177
      // Predicated region
      $region29: #{tpu_custom_call.1} parent=5 // pred_check
        _
      $region30: #{tpu_custom_call.1} parent=5 // pred_check_branch
        %180 = sbr.rel (%p177) target = $region32
      $region31: #{tpu_custom_call.1} parent=5 // pred_region
        %s181 = ssub.s32 %s10, 1
        // Predicated region
        $region33: #{tpu_custom_call.1} parent=31 // pred_check
          %p182 = pneg %p74
        $region34: #{tpu_custom_call.1} parent=31 // pred_check_branch
          %184 = sbr.rel (%p182) target = $region36
        $region35: #{tpu_custom_call.1} parent=31 // pred_region
          %185 = dma.done [#allocation7], 1024
        $region36: #{tpu_custom_call.1} parent=31 // pred_fallthru
          _
        %p186 = scmp.lt.s32.totalorder %s19, 1
        %s187 = scalar_select %p186, %s19, 1
        %s188 = smul.addr %s187, 8
        %s189 = scalar_lea.vmem %s0, %s188
        %p190 = pneg %p48
        %p191 = pneg %p45
        %p192 = pneg %p74
        %p193 = pneg %p71
        %p194 = scmp.lt.s32.totalorder %s19, 1
        %s195 = scalar_select %p194, %s19, 1
        %s196 = smul.addr %s195, 8
        %s197 = scalar_lea.vmem %s2, %s196
        %p198 = pneg %p100
        %p199 = pneg %p97
        %p200 = pneg %p126
        %p201 = pneg %p123
        %p202 = scmp.lt.s32.totalorder %s19, 1
        %s203 = scalar_select %p202, %s19, 1
        %s204 = smul.addr %s203, 8
        %s205 = scalar_lea.vmem %s3, %s204
        %p206 = scmp.lt.s32.totalorder %s19, 1
        %s207 = scalar_select %p206, %s19, 1
        %s208 = smul.addr %s207, 8
        %s209 = scalar_lea.vmem %s0, %s208
        %s210 = smul.u32 2, %s20
        %p211 = scmp.lt.s32.totalorder %s19, 1
        %s212 = scalar_select %p211, %s19, 1
        %s213 = smul.addr %s212, 8
        %s214 = scalar_lea.vmem %s2, %s213
        %p215 = scmp.lt.s32.totalorder %s19, 1
        %s216 = scalar_select %p215, %s19, 1
        %s217 = smul.addr %s216, 8
        %s218 = scalar_lea.vmem %s3, %s217
        %p220 = scmp.eq.s32.totalorder %s20, 0
        // Predicated region
        $region37: #{tpu_custom_call.1} parent=31 // pred_check
          %p221 = pneg %p220
        $region38: #{tpu_custom_call.1} parent=31 // pred_check_branch
          %223 = sbr.rel (%p221) target = $region40
        $region39: #{tpu_custom_call.1} parent=31 // pred_region
          %v224 = vld [vmem:[%s209] sm:$0xff]
          %v225 = vmul.f32 %v224, %v224
          %vm226 = vcmask 523264
          %v227 = vsel %vm226, %v225, 0.0
          %228 = vadd.xlane.f32.xlu0 %v227
          %v229 = vpop.xlane.xlu0 %228
          %v230 = vmax.f32 %v229, 1e-24
          %v231 = vrsqrt.pop %v230
          %v232 = vmul.f32 %v224, %v231
          %v233 = vmul.f32 %v232, 64.0
          %v234 = vpack.c.bf16 %v233, %v233
          %vm235 = vcmask 519168
          %236 = vst.msk [vmem:[#allocation2] sm:$0xf] %vm235, %v234
          %vm237 = vcmask 7168
          %238 = vst.msk [vmem:[#allocation3] sm:$0xff] %vm237, -1e+30
          %239 = vst.msk [vmem:[#allocation4] sm:$0xff] %vm237, 0.0
          %240 = vst.msk [vmem:[#allocation5] sm:$0xff] %vm237, 0.0
        $region40: #{tpu_custom_call.1} parent=31 // pred_fallthru
          _
        %v241 = vld [vmem:[#allocation2] sm:$0xf]
        %v242 = vld [vmem:[#allocation6] sm:$0xff]
        %v243 = vld [vmem:[#allocation6 + $0x8] sm:$0xff]
        %v244 = vld [vmem:[#allocation6 + $0x10] sm:$0xff]
        %v245 = vld [vmem:[#allocation6 + $0x18] sm:$0xff]
        %v246 = vld [vmem:[#allocation6 + $0x20] sm:$0xff]
        %v247 = vld [vmem:[#allocation6 + $0x28] sm:$0xff]
        %v248 = vld [vmem:[#allocation6 + $0x30] sm:$0xff]
        %v249 = vld [vmem:[#allocation6 + $0x38] sm:$0xff]
        %v258 = vunpack.c.l.b16 %v242
        %v259 = vunpack.c.h.b16 %v242
        %v260 = vunpack.c.l.b16 %v243
        %v261 = vunpack.c.h.b16 %v243
        %v262 = vunpack.c.l.b16 %v244
        %v263 = vunpack.c.h.b16 %v244
        %v264 = vunpack.c.l.b16 %v245
        %v265 = vunpack.c.h.b16 %v245
        %v266 = vunpack.c.l.b16 %v246
        %v267 = vunpack.c.h.b16 %v246
        %v268 = vunpack.c.l.b16 %v247
        %v269 = vunpack.c.h.b16 %v247
        %v270 = vunpack.c.l.b16 %v248
        %v271 = vunpack.c.h.b16 %v248
        %v272 = vunpack.c.l.b16 %v249
        %v273 = vunpack.c.h.b16 %v249
        %v274 = vpack.c.b16 %v260, %v258
        %v275 = vpack.c.b16 %v261, %v259
        %v276 = vpack.c.b16 %v264, %v262
        %v277 = vpack.c.b16 %v265, %v263
        %v278 = vpack.c.b16 %v268, %v266
        %v279 = vpack.c.b16 %v269, %v267
        %v280 = vpack.c.b16 %v272, %v270
        %v281 = vpack.c.b16 %v273, %v271
        %vm290 = vcmask 523264
        %v292 = vsel %vm290, %v241, 0
        %294 = vmatprep.subr.bf16.mxu0 %v275
        %295 = vmatpush1.bf16.msra.mxu0 %v274
        %296 = vmatprep.subr.bf16.mxu0 %v277
        %297 = vmatpush1.bf16.msra.mxu0 %v276
        %298 = vmatprep.subr.bf16.mxu0 %v279
        %299 = vmatpush1.bf16.msra.mxu0 %v278
        %300 = vmatprep.subr.bf16.mxu0 %v281
        %301 = vmatpush1.bf16.msra.mxu0 %v280
        %302 = vmatprep.subr.bf16.mxu0 0
        %303 = vmatpush1.bf16.msra.mxu0 0
        %304 = vmatprep.subr.bf16.mxu0 0
        %305 = vmatpush1.bf16.msra.mxu0 0
        %306 = vmatprep.subr.bf16.mxu0 0
        %307 = vmatpush1.bf16.msra.mxu0 0
        %308 = vmatprep.subr.bf16.mxu0 0
        %309 = vmatpush1.bf16.msra.mxu0 0
        %310 = vmatprep.subr.bf16.mxu0 0
        %311 = vmatpush1.bf16.msra.mxu0 0
        %312 = vmatprep.subr.bf16.mxu0 0
        %313 = vmatpush1.bf16.msra.mxu0 0
        %314 = vmatprep.subr.bf16.mxu0 0
        %315 = vmatpush1.bf16.msra.mxu0 0
        %316 = vmatprep.subr.bf16.mxu0 0
        %317 = vmatpush1.bf16.msra.mxu0 0
        %318 = vmatprep.subr.bf16.mxu0 0
        %319 = vmatpush1.bf16.msra.mxu0 0
        %320 = vmatprep.subr.bf16.mxu0 0
        %321 = vmatpush1.bf16.msra.mxu0 0
        %322 = vmatprep.subr.bf16.mxu0 0
        %323 = vmatpush1.bf16.msra.mxu0 0
        %324 = vmatprep.subr.bf16.mxu0 0
        %325 = vmatpush1.bf16.msra.mxu0 0
        %326 = vmatprep.mubr.bf16.mxu0 0
        %327 = vmatmul.mubr.bf16.gmra.mrb[0].mxu0 %v292
        %v328 = vpop.f32.mrb[0].mxu0
        %v329 = vadd.f32 0.0, %v328
        %v330 = vpop.f32.mrb[0].mxu0
        %v331 = vadd.f32 0.0, %v330
        %v332 = vpop.f32.mrb[0].mxu0
        %v333 = vpop.f32.mrb[0].mxu0
        %334 = vdwg.mxu0
        %v335 = vld [vmem:[%s214] sm:$0xff]
        %s336 = smul.u32 %s20, 256
        %v337 = vlaneseq
        %v338 = vand.u32 %v337, 127
        %v339 = vadd.s32 %v338, 128
        %v340 = vstv %s336
        %v341 = vadd.s32 %v340, %v338
        %v342 = vadd.s32 %v340, %v339
        %343 = vset.pattern.permute.xlu0 0
        %344 = vperm.xlu0 %343, %v335
        %v345 = vpop.permute.xlu0 %344
        %vm346 = vcmp.eq.s32.totalorder %v341, %v345
        %vm347 = vcmp.eq.s32.totalorder %v342, %v345
        %v348 = vld [vmem:[#allocation5] sm:$0xff]
        %v349 = vsel %vm346, %v329, 0.0
        %v350 = vsel %vm347, %v331, 0.0
        %v351 = vadd.f32 %v349, %v350
        %352 = vadd.xlane.f32.xlu0 %v351
        %v353 = vpop.xlane.xlu0 %352
        %v354 = vadd.f32 %v348, %v353
        %vm355 = vcmask 7168
        %356 = vst.msk [vmem:[#allocation5] sm:$0xff] %vm355, %v354
        %v357 = vsel %vm346, -1e+30, %v329
        %v358 = vsel %vm347, -1e+30, %v331
        %v359 = vmax.f32 %v357, %v358
        %360 = vmax.xlane.f32.xlu0 %v359
        %v361 = vpop.xlane.xlu0 %360
        %v362 = vld [vmem:[#allocation3] sm:$0xff]
        %v363 = vmax.f32 %v362, %v361
        %v364 = vld [vmem:[#allocation4] sm:$0xff]
        %v365 = vsub.f32 %v362, %v363
        %v366 = vmul.f32 %v365, 1.442695
        %v367 = vpow.pop %v366
        %v368 = vmul.f32 %v364, %v367
        %370 = vset.pattern.permute.xlu0 0
        %371 = vperm.xlu0 %370, %v363
        %v372 = vpop.permute.xlu0 %371
        %v374 = vsub.f32 %v357, %v372
        %v375 = vsub.f32 %v358, %v372
        %v376 = vmul.f32 %v374, 1.442695
        %v377 = vpow.pop %v376
        %v378 = vmul.f32 %v375, 1.442695
        %v379 = vpow.pop %v378
        %v380 = vadd.f32 %v377, %v379
        %381 = vadd.xlane.f32.xlu0 %v380
        %v382 = vpop.xlane.xlu0 %381
        %v383 = vadd.f32 %v368, %v382
        %384 = vst.msk [vmem:[#allocation4] sm:$0xff] %vm355, %v383
        %385 = vst.msk [vmem:[#allocation3] sm:$0xff] %vm355, %v363
        // Predicated region
        $region41: #{tpu_custom_call.1} parent=31 // pred_check
          %p386 = pneg %p220
        $region42: #{tpu_custom_call.1} parent=31 // pred_check_branch
          %388 = sbr.rel (%p386) target = $region44
        $region43: #{tpu_custom_call.1} parent=31 // pred_region
          %v389 = vld [vmem:[#allocation5] sm:$0xff]
          %v390 = vmul.f32 %v389, 0.015625
          %v391 = vld [vmem:[#allocation3] sm:$0xff]
          %v392 = vld [vmem:[#allocation4] sm:$0xff]
          %v393 = vmax.f32 %v390, -0.9999999
          %v394 = vmin.f32 %v393, 0.9999999
          %v395 = vmul.f32 %v394, 0.87758255
          %v396 = vmul.f32 %v394, %v394
          %v397 = vsub.f32 1.0, %v396
          %v398 = vrsqrt.pop %v397
          %v399 = vmul.f32 %v397, %v398
          %vm400 = vcmp.eq.f32.partialorder %v397, inf
          %v401 = vsel %vm400, %v397, %v399
          %vm402 = vcmp.eq.f32.partialorder %v397, 0.0
          %v403 = vand.u32 %v397, 2147483648
          %v404 = vsel %vm402, %v403, %v401
          %v405 = vmul.f32 %v404, 0.47942555
          %v406 = vsub.f32 %v395, %v405
          %v407 = vmul.f32 %v406, 64.0
          %v408 = vmax.f32 %v407, %v391
          %v409 = vsub.f32 %v407, %v408
          %v410 = vmul.f32 %v409, 1.442695
          %v411 = vpow.pop %v410
          %v412 = vsub.f32 %v391, %v408
          %v413 = vmul.f32 %v412, 1.442695
          %v414 = vpow.pop %v413
          %v415 = vmul.f32 %v414, %v392
          %v416 = vadd.f32 %v411, %v415
          %v417 = vlog2.pop %v416
          %v418 = vmul.f32 %v417, 0.6931472
          %v419 = vadd.f32 %v408, %v418
          %v420 = vsub.f32 %v407, %v419
          %421 = vst.msk [vmem:[%s218] sm:$0xff] %vm355, %v420
        $region44: #{tpu_custom_call.1} parent=31 // pred_fallthru
          _
        %p422 = scmp.lt.s32.totalorder %s19, 1
        %s423 = scalar_select %p422, %s19, 1
        %s424 = smul.addr %s423, 8
        %s425 = scalar_lea.vmem %s3, %s424
        // Predicated region
        $region45: #{tpu_custom_call.1} parent=31 // pred_check
          %p426 = pneg %p123
        $region46: #{tpu_custom_call.1} parent=31 // pred_check_branch
          %428 = sbr.rel (%p426) target = $region48
        $region47: #{tpu_custom_call.1} parent=31 // pred_region
          _
        $region48: #{tpu_custom_call.1} parent=31 // pred_fallthru
          _
      $region32: #{tpu_custom_call.1} parent=5 // pred_fallthru
        _
      %p429 = scmp.le.s32.totalorder 2, %s10
      // Predicated region
      $region49: #{tpu_custom_call.1} parent=5 // pred_check
        %p430 = pneg %p429
      $region50: #{tpu_custom_call.1} parent=5 // pred_check_branch
        %432 = sbr.rel (%p430) target = $region52
      $region51: #{tpu_custom_call.1} parent=5 // pred_region
        %s433 = ssub.s32 %s10, 2
        // Predicated region
        $region53: #{tpu_custom_call.1} parent=51 // pred_check
          %p434 = pneg %p129
        $region54: #{tpu_custom_call.1} parent=51 // pred_check_branch
          %436 = sbr.rel (%p434) target = $region56
        $region55: #{tpu_custom_call.1} parent=51 // pred_region
          %p437 = scmp.lt.s32.totalorder %s21, 1
          %s438 = scalar_select %p437, %s21, 1
          %s439 = smul.addr %s438, 8
          %s440 = scalar_lea.vmem %s3, %s439
        $region56: #{tpu_custom_call.1} parent=51 // pred_fallthru
          _
      $region52: #{tpu_custom_call.1} parent=5 // pred_fallthru
        _
    $region6: #{tpu_custom_call.1} parent=1 // loop_footer
      %s14 = sadd.s32 1, %s10
    $region7: #{tpu_custom_call.1} parent=1 // loop_footer_branch
      %9 = sbr.rel target = $region3
    $region8: #{tpu_custom_call.1} parent=1 // loop_exit
      _
    %441 = vsyncpa [#allocation7], 1
    %s442 = scalar_lea.sflag [#allocation7], 1
    %443 = vsyncpa %s442, 1

</llo_original>
